<compile_context>
chip_gen: v7x
topology: tpu7x:2x2x1
jax: 0.10.0
libtpu: 0.0.40
codegen_flags: <defaults>
</compile_context>

<pallas_src>
import jax
import jax.numpy as jnp
from jax import lax
from jax.experimental import pallas as pl
from jax.experimental.pallas import tpu as pltpu


# ----------------------------- model dimensions -----------------------------
BATCH = 2
SEQ = 8
INPUT_DIM = 16           # raw note-feature dim fed to note_embedder
NOTE_EMB = 32            # note_embedder output size
ENC_SIZE = 32            # net_param.encoder.size
PERF_DIM = ENC_SIZE * 2  # performance_encoder output / out_fc input
NUM_LABEL = 11           # net_param.num_label

LANE = 128               # TPU lane width: all feature dims padded to this
SUBLANE = 8
N_LAYERS = 5             # emb, score, perf, fc1, fc2
BIAS_ROW = 120           # sublane-aligned, above every fan_in (<= 64) -> safe
INV_SQRT2 = 0.7071067811865476


# --------------------------------- kernel -----------------------------------
def virtuoso_kernel(x_ref, w_ref, out_ref):
    """Fused forward over the whole token slab.

    x_ref  : (Np, 128)      tokens, features zero-padded to the lane width
    w_ref  : (5, 128, 128)  page k: weight k (top-left) + bias k in row BIAS_ROW
    out_ref: (Np, 128)      lane-dense logits; cols >= NUM_LABEL are padding
    """
    x = x_ref[...]

    def dense(a, k):
        # Lane BIAS_ROW of `a` is exactly 0 (all feature dims <= 64), so the
        # bias row never contributes to the contraction; it is added explicitly.
        return (jnp.dot(a, w_ref[k], preferred_element_type=jnp.float32)
                + w_ref[k, BIAS_ROW:BIAS_ROW + 1, :])

    # ---- note_embedder ------------------------------------------------------
    # TODO(synk): real note_embedder class is resolved dynamically (nemb.*);
    # stand-in is a single dense projection with ReLU.
    h = jnp.maximum(dense(x, 0), 0.0)

    # ---- score_encoder(x_embedded, edges, note_locations) -------------------
    # TODO(synk): real score_encoder is a hierarchical graph/RNN encoder
    # (encs.*); edges / note_locations are ignored by this dense stand-in.
    s = jnp.tanh(dense(h, 1))

    # ---- performance_encoder(score_embedding, y, ...) -----------------------
    # TODO(synk): real performance_encoder (encp.*) consumes y / expanded_y;
    # stand-in dense projection to encoder.size * 2.
    p = jnp.tanh(dense(s, 2))

    # ---- out_fc head (exact semantics of the PyTorch module) ----------------
    # Dropout -> Linear(2E,2E) -> GELU(exact/erf) -> Dropout -> Linear(2E,L)
    z = dense(p, 3)
    z = 0.5 * z * (1.0 + lax.erf(z * jnp.float32(INV_SQRT2)))
    out_ref[...] = dense(z, 4).astype(out_ref.dtype)


# --------------------------------- wrapper ----------------------------------
def pack_params(params):
    """Pack 10 parameter tensors into one (5, 128, 128) weight+bias slab.

    Page k: W_k (fan_in, fan_out) at [:fan_in, :fan_out], bias_k at row BIAS_ROW.
    Done once at model-load time; the forward pass only DMAs this single slab.
    """
    (w_emb, b_emb, w_sc, b_sc, w_pf, b_pf, w1, b1, w2, b2) = params
    ws = (w_emb, w_sc, w_pf, w1, w2)
    bs = (b_emb, b_sc, b_pf, b1, b2)
    pages = []
    for w, b in zip(ws, bs):
        w = w.astype(jnp.float32)
        b = b.reshape(-1).astype(jnp.float32)
        page = jnp.zeros((LANE, LANE), jnp.float32)
        page = page.at[: w.shape[0], : w.shape[1]].set(w)
        page = page.at[BIAS_ROW, : b.shape[0]].set(b)
        pages.append(page)
    return jnp.stack(pages)          # (5, 128, 128)


@jax.jit
def virtuoso_forward(x, w_slab):
    """x: (batch, seq, input_dim), w_slab: packed params -> (batch, seq, num_label)."""
    b, t, f = x.shape
    assert f <= LANE
    n = b * t
    n_pad = ((n + SUBLANE - 1) // SUBLANE) * SUBLANE   # sublane-align rows

    x2d = x.reshape(n, f).astype(jnp.float32)
    x_slab = jnp.pad(x2d, ((0, n_pad - n), (0, LANE - f)))   # lane-dense input

    vmem = pl.BlockSpec(memory_space=pltpu.MemorySpace.VMEM)
    out = pl.pallas_call(
        virtuoso_kernel,
        out_shape=jax.ShapeDtypeStruct((n_pad, LANE), jnp.float32),
        in_specs=[vmem, vmem],        # whole arrays resident in VMEM, 2 DMAs
        out_specs=vmem,               # lane-dense (Np, 128) output
    )(x_slab, w_slab)

    # Free layout plumbing: strip lane / row padding outside the kernel.
    return out[:n, :NUM_LABEL].reshape(b, t, NUM_LABEL)


def init_params(key):
    """Deterministic synthetic parameter init (shapes follow the module)."""
    ks = jax.random.split(key, 10)

    def dense(k, fan_in, fan_out):
        scale = 1.0 / jnp.sqrt(jnp.float32(fan_in))
        w = jax.random.uniform(k, (fan_in, fan_out), jnp.float32, -scale, scale)
        b = jnp.zeros((1, fan_out), jnp.float32)
        return w, b

    w_emb, b_emb = dense(ks[0], INPUT_DIM, NOTE_EMB)
    w_sc, b_sc = dense(ks[1], NOTE_EMB, ENC_SIZE)
    w_pf, b_pf = dense(ks[2], ENC_SIZE, PERF_DIM)
    w1, b1 = dense(ks[3], PERF_DIM, PERF_DIM)        # out_fc Linear(2E, 2E)
    w2, b2 = dense(ks[4], PERF_DIM, NUM_LABEL)       # out_fc Linear(2E, L)
    return (w_emb, b_emb, w_sc, b_sc, w_pf, b_pf, w1, b1, w2, b2)


def reference_forward(x, params):
    """Plain-JAX reference of the same math, for a sanity check."""
    (w_emb, b_emb, w_sc, b_sc, w_pf, b_pf, w1, b1, w2, b2) = params
    b, t, f = x.shape
    x2d = x.reshape(b * t, f).astype(jnp.float32)
    h = jnp.maximum(x2d @ w_emb + b_emb, 0.0)
    s = jnp.tanh(h @ w_sc + b_sc)
    p = jnp.tanh(s @ w_pf + b_pf)
    z = p @ w1 + b1
    z = 0.5 * z * (1.0 + lax.erf(z / jnp.sqrt(2.0)))
    out = z @ w2 + b2
    return out.reshape(b, t, NUM_LABEL)


if __name__ == "__main__":
    key = jax.random.PRNGKey(0)
    kx, kp = jax.random.split(key)

    x = jax.random.normal(kx, (BATCH, SEQ, INPUT_DIM), jnp.float32)
    params = init_params(kp)
    w_slab = pack_params(params)          # load-time packing, done once

    logits = virtuoso_forward(x, w_slab)
    jax.block_until_ready(logits)

    ref = reference_forward(x, params)
    assert logits.shape == (BATCH, SEQ, NUM_LABEL)
    assert jnp.allclose(logits, ref, atol=1e-5, rtol=1e-5)

    print("KERNEL_OK")
</pallas_src>

<mosaic_0001>
module attributes {stable_mosaic.version = 11 : i64} {
  func.func @virtuoso_kernel(%arg0: memref<16x128xf32, #tpu.memory_space<vmem>>, %arg1: memref<5x128x128xf32, #tpu.memory_space<vmem>>, %arg2: memref<16x128xf32, #tpu.memory_space<vmem>>) attributes {dimension_semantics = [], scalar_prefetch = 0 : i64, scratch_operands = 0 : i64, tpu.core_type = #tpu.core_type<tc>} {
    %c0 = arith.constant 0 : index
    %c0_0 = arith.constant 0 : index
    %0 = vector.load %arg0[%c0, %c0_0] : memref<16x128xf32, #tpu.memory_space<vmem>>, vector<16x128xf32>
    %c0_1 = arith.constant 0 : index
    %c0_2 = arith.constant 0 : index
    %c0_3 = arith.constant 0 : index
    %1 = vector.load %arg1[%c0_1, %c0_2, %c0_3] : memref<5x128x128xf32, #tpu.memory_space<vmem>>, vector<1x128x128xf32>
    %2 = vector.shape_cast %1 : vector<1x128x128xf32> to vector<128x128xf32>
    %cst = arith.constant dense<0.000000e+00> : vector<16x128xf32>
    %3 = tpu.matmul %0, %2, %cst {dimension_numbers = #tpu.dot_dimension_numbers<[1], [0], [0], [1], [0, 0, 1, 1], [], []>} : vector<16x128xf32>, vector<128x128xf32>, vector<16x128xf32> -> vector<16x128xf32>
    %c0_4 = arith.constant 0 : index
    %c120 = arith.constant 120 : index
    %c0_5 = arith.constant 0 : index
    %4 = vector.load %arg1[%c0_4, %c120, %c0_5] : memref<5x128x128xf32, #tpu.memory_space<vmem>>, vector<1x1x128xf32>
    %5 = vector.shape_cast %4 : vector<1x1x128xf32> to vector<1x128xf32>
    %6 = vector.broadcast %5 : vector<1x128xf32> to vector<16x128xf32>
    %7 = arith.addf %3, %6 : vector<16x128xf32>
    %cst_6 = arith.constant 0.000000e+00 : f32
    %8 = vector.broadcast %cst_6 : f32 to vector<16x128xf32>
    %9 = arith.maximumf %7, %8 : vector<16x128xf32>
    %c1 = arith.constant 1 : index
    %c0_7 = arith.constant 0 : index
    %c0_8 = arith.constant 0 : index
    %10 = vector.load %arg1[%c1, %c0_7, %c0_8] : memref<5x128x128xf32, #tpu.memory_space<vmem>>, vector<1x128x128xf32>
    %11 = vector.shape_cast %10 : vector<1x128x128xf32> to vector<128x128xf32>
    %cst_9 = arith.constant dense<0.000000e+00> : vector<16x128xf32>
    %12 = tpu.matmul %9, %11, %cst_9 {dimension_numbers = #tpu.dot_dimension_numbers<[1], [0], [0], [1], [0, 0, 1, 1], [], []>} : vector<16x128xf32>, vector<128x128xf32>, vector<16x128xf32> -> vector<16x128xf32>
    %c1_10 = arith.constant 1 : index
    %c120_11 = arith.constant 120 : index
    %c0_12 = arith.constant 0 : index
    %13 = vector.load %arg1[%c1_10, %c120_11, %c0_12] : memref<5x128x128xf32, #tpu.memory_space<vmem>>, vector<1x1x128xf32>
    %14 = vector.shape_cast %13 : vector<1x1x128xf32> to vector<1x128xf32>
    %15 = vector.broadcast %14 : vector<1x128xf32> to vector<16x128xf32>
    %16 = arith.addf %12, %15 : vector<16x128xf32>
    %17 = math.tanh %16 : vector<16x128xf32>
    %c2 = arith.constant 2 : index
    %c0_13 = arith.constant 0 : index
    %c0_14 = arith.constant 0 : index
    %18 = vector.load %arg1[%c2, %c0_13, %c0_14] : memref<5x128x128xf32, #tpu.memory_space<vmem>>, vector<1x128x128xf32>
    %19 = vector.shape_cast %18 : vector<1x128x128xf32> to vector<128x128xf32>
    %cst_15 = arith.constant dense<0.000000e+00> : vector<16x128xf32>
    %20 = tpu.matmul %17, %19, %cst_15 {dimension_numbers = #tpu.dot_dimension_numbers<[1], [0], [0], [1], [0, 0, 1, 1], [], []>} : vector<16x128xf32>, vector<128x128xf32>, vector<16x128xf32> -> vector<16x128xf32>
    %c2_16 = arith.constant 2 : index
    %c120_17 = arith.constant 120 : index
    %c0_18 = arith.constant 0 : index
    %21 = vector.load %arg1[%c2_16, %c120_17, %c0_18] : memref<5x128x128xf32, #tpu.memory_space<vmem>>, vector<1x1x128xf32>
    %22 = vector.shape_cast %21 : vector<1x1x128xf32> to vector<1x128xf32>
    %23 = vector.broadcast %22 : vector<1x128xf32> to vector<16x128xf32>
    %24 = arith.addf %20, %23 : vector<16x128xf32>
    %25 = math.tanh %24 : vector<16x128xf32>
    %c3 = arith.constant 3 : index
    %c0_19 = arith.constant 0 : index
    %c0_20 = arith.constant 0 : index
    %26 = vector.load %arg1[%c3, %c0_19, %c0_20] : memref<5x128x128xf32, #tpu.memory_space<vmem>>, vector<1x128x128xf32>
    %27 = vector.shape_cast %26 : vector<1x128x128xf32> to vector<128x128xf32>
    %cst_21 = arith.constant dense<0.000000e+00> : vector<16x128xf32>
    %28 = tpu.matmul %25, %27, %cst_21 {dimension_numbers = #tpu.dot_dimension_numbers<[1], [0], [0], [1], [0, 0, 1, 1], [], []>} : vector<16x128xf32>, vector<128x128xf32>, vector<16x128xf32> -> vector<16x128xf32>
    %c3_22 = arith.constant 3 : index
    %c120_23 = arith.constant 120 : index
    %c0_24 = arith.constant 0 : index
    %29 = vector.load %arg1[%c3_22, %c120_23, %c0_24] : memref<5x128x128xf32, #tpu.memory_space<vmem>>, vector<1x1x128xf32>
    %30 = vector.shape_cast %29 : vector<1x1x128xf32> to vector<1x128xf32>
    %31 = vector.broadcast %30 : vector<1x128xf32> to vector<16x128xf32>
    %32 = arith.addf %28, %31 : vector<16x128xf32>
    %cst_25 = arith.constant 5.000000e-01 : f32
    %33 = vector.broadcast %cst_25 : f32 to vector<16x128xf32>
    %34 = arith.mulf %33, %32 : vector<16x128xf32>
    %cst_26 = arith.constant 0.707106769 : f32
    %35 = vector.broadcast %cst_26 : f32 to vector<16x128xf32>
    %36 = arith.mulf %32, %35 : vector<16x128xf32>
    %37 = math.erf %36 : vector<16x128xf32>
    %cst_27 = arith.constant 1.000000e+00 : f32
    %38 = vector.broadcast %cst_27 : f32 to vector<16x128xf32>
    %39 = arith.addf %38, %37 : vector<16x128xf32>
    %40 = arith.mulf %34, %39 : vector<16x128xf32>
    %c4 = arith.constant 4 : index
    %c0_28 = arith.constant 0 : index
    %c0_29 = arith.constant 0 : index
    %41 = vector.load %arg1[%c4, %c0_28, %c0_29] : memref<5x128x128xf32, #tpu.memory_space<vmem>>, vector<1x128x128xf32>
    %42 = vector.shape_cast %41 : vector<1x128x128xf32> to vector<128x128xf32>
    %cst_30 = arith.constant dense<0.000000e+00> : vector<16x128xf32>
    %43 = tpu.matmul %40, %42, %cst_30 {dimension_numbers = #tpu.dot_dimension_numbers<[1], [0], [0], [1], [0, 0, 1, 1], [], []>} : vector<16x128xf32>, vector<128x128xf32>, vector<16x128xf32> -> vector<16x128xf32>
    %c4_31 = arith.constant 4 : index
    %c120_32 = arith.constant 120 : index
    %c0_33 = arith.constant 0 : index
    %44 = vector.load %arg1[%c4_31, %c120_32, %c0_33] : memref<5x128x128xf32, #tpu.memory_space<vmem>>, vector<1x1x128xf32>
    %45 = vector.shape_cast %44 : vector<1x1x128xf32> to vector<1x128xf32>
    %46 = vector.broadcast %45 : vector<1x128xf32> to vector<16x128xf32>
    %47 = arith.addf %43, %46 : vector<16x128xf32>
    %c0_34 = arith.constant 0 : index
    %c0_35 = arith.constant 0 : index
    %48 = vector.load %arg2[%c0_34, %c0_35] : memref<16x128xf32, #tpu.memory_space<vmem>>, vector<16x128xf32>
    tpu.vector_store %arg2[%c0_34, %c0_35], %47 {strides = array<i32>} : memref<16x128xf32, #tpu.memory_space<vmem>>, vector<16x128xf32>,
    return
  }
}

</mosaic_0001>

<llo_original>
// kernel: virtuoso_forward.1
$region0: #{virtuoso_forward.1}
  #allocation0 [shape = 'u32[]', space=smem, size = 0x4, offset = 0x4, fixed_abs, tag = 'smem constant byte address 0x4 - core index']
  #allocation1 [shape = 'u32[144,128]{1,0:T(1,128)}', space=vmem, size = 0x12000, scoped, tag = 'internal scratch']
  %s0 = inlined_call_operand.vmem [shape: f32[16,128], index: 0, kind: input, shape index: {}]
  %s1 = inlined_call_operand.hbm [shape: f32[5,128,128], index: 1, kind: input, shape index: {}]
  %s2 = inlined_call_operand.vmem [shape: f32[16,128], index: 2, kind: output, shape index: {}]
  %s3 = sld [smem:[#allocation0]]
  $region22: #{virtuoso_forward.1} parent=0
    _
  %s5 = ssub.s32 1, %s3
  %s6 = scalar_select 0, %s5, %s3
  $region1: #{virtuoso_forward.1} parent=0
    #allocation2 [shape = 'u8[327680]{0}', space=vmem, size = 0x50000, scoped, tag = 'input window, operand 1, single buffered']
    #allocation3 [shape = 's32[1]{0}', space=sflag, size = 0x4, scoped, tag = 'scoped memory for virtuoso_forward.1']
    %7 = vsyncpa [#allocation3], 0
    // Predicated region
    $region2: #{virtuoso_forward.1} parent=1 // pred_check
      _
    $region3: #{virtuoso_forward.1} parent=1 // pred_check_branch
      %9 = sbr.rel (0) target = $region5
    $region4: #{virtuoso_forward.1} parent=1 // pred_region
      _
    $region5: #{virtuoso_forward.1} parent=1 // pred_fallthru
      _
    // Predicated region
    $region6: #{virtuoso_forward.1} parent=1 // pred_check
      _
    $region7: #{virtuoso_forward.1} parent=1 // pred_check_branch
      %11 = sbr.rel (0) target = $region9
    $region8: #{virtuoso_forward.1} parent=1 // pred_region
      %s13 = ssub.s32 10240, 10240
      %14 = vsyncadd [#allocation3], %s13
      %s15 = sshll.u32 [#allocation2], 4
      %s16 = int_to_ptr.vmem [resolvable:$true] %s15
      %21 = dma.hbm_to_vmem [thread:$0]  %s1, 10240, %s16, [#allocation3], 128, 128, 8
    $region9: #{virtuoso_forward.1} parent=1 // pred_fallthru
      _
    // Predicated region
    $region10: #{virtuoso_forward.1} parent=1 // pred_check
      _
    $region11: #{virtuoso_forward.1} parent=1 // pred_check_branch
      %23 = sbr.rel (0) target = $region13
    $region12: #{virtuoso_forward.1} parent=1 // pred_region
      %24 = dma.done [#allocation3], 10240
    $region13: #{virtuoso_forward.1} parent=1 // pred_fallthru
      _
    %v25 = vld [vmem:[%s0] sm:$0xff]
    %v26 = vld [vmem:[%s0 + $0x8] sm:$0xff]
    %v27 = vld [vmem:[#allocation2] sm:$0xff]
    %v28 = vld [vmem:[#allocation2 + $0x8] sm:$0xff]
    %v29 = vld [vmem:[#allocation2 + $0x10] sm:$0xff]
    %v30 = vld [vmem:[#allocation2 + $0x18] sm:$0xff]
    %v31 = vld [vmem:[#allocation2 + $0x20] sm:$0xff]
    %v32 = vld [vmem:[#allocation2 + $0x28] sm:$0xff]
    %v33 = vld [vmem:[#allocation2 + $0x30] sm:$0xff]
    %v34 = vld [vmem:[#allocation2 + $0x38] sm:$0xff]
    %v35 = vld [vmem:[#allocation2 + $0x40] sm:$0xff]
    %v36 = vld [vmem:[#allocation2 + $0x48] sm:$0xff]
    %v37 = vld [vmem:[#allocation2 + $0x50] sm:$0xff]
    %v38 = vld [vmem:[#allocation2 + $0x58] sm:$0xff]
    %v39 = vld [vmem:[#allocation2 + $0x60] sm:$0xff]
    %v40 = vld [vmem:[#allocation2 + $0x68] sm:$0xff]
    %v41 = vld [vmem:[#allocation2 + $0x70] sm:$0xff]
    %v42 = vld [vmem:[#allocation2 + $0x78] sm:$0xff]
    %v43 = vld [vmem:[#allocation2 + $0x78] sm:$0x1]
    %v44 = vlaneseq
    %v45 = vshrl.u32 %v44, 7
    %v46 = vsub.s32 0, %v45
    %v47 = vrot.slane %v43, %v46
    %48 = vmatprep.subr.mxu0 0.0
    %49 = vmatpush1.msra.mxu0 %v27
    %50 = vmatprep.subr.mxu0 0.0
    %51 = vmatpush1.msra.mxu0 %v28
    %52 = vmatprep.subr.mxu0 0.0
    %53 = vmatpush1.msra.mxu0 %v29
    %54 = vmatprep.subr.mxu0 0.0
    %55 = vmatpush1.msra.mxu0 %v30
    %56 = vmatprep.subr.mxu0 0.0
    %57 = vmatpush1.msra.mxu0 %v31
    %58 = vmatprep.subr.mxu0 0.0
    %59 = vmatpush1.msra.mxu0 %v32
    %60 = vmatprep.subr.mxu0 0.0
    %61 = vmatpush1.msra.mxu0 %v33
    %62 = vmatprep.subr.mxu0 0.0
    %63 = vmatpush1.msra.mxu0 %v34
    %64 = vmatprep.subr.mxu0 0.0
    %65 = vmatpush1.msra.mxu0 %v35
    %66 = vmatprep.subr.mxu0 0.0
    %67 = vmatpush1.msra.mxu0 %v36
    %68 = vmatprep.subr.mxu0 0.0
    %69 = vmatpush1.msra.mxu0 %v37
    %70 = vmatprep.subr.mxu0 0.0
    %71 = vmatpush1.msra.mxu0 %v38
    %72 = vmatprep.subr.mxu0 0.0
    %73 = vmatpush1.msra.mxu0 %v39
    %74 = vmatprep.subr.mxu0 0.0
    %75 = vmatpush1.msra.mxu0 %v40
    %76 = vmatprep.subr.mxu0 0.0
    %77 = vmatpush1.msra.mxu0 %v41
    %78 = vmatprep.subr.mxu0 0.0
    %79 = vmatpush1.msra.mxu0 %v42
    %80 = vmatprep.subr.mxu0 0.0
    %81 = vmatpush1.msra.mxu0 0.0
    %82 = vmatprep.subr.mxu0 0.0
    %83 = vmatpush1.msra.mxu0 0.0
    %84 = vmatprep.subr.mxu0 0.0
    %85 = vmatpush1.msra.mxu0 0.0
    %86 = vmatprep.subr.mxu0 0.0
    %87 = vmatpush1.msra.mxu0 0.0
    %88 = vmatprep.subr.mxu0 0.0
    %89 = vmatpush1.msra.mxu0 0.0
    %90 = vmatprep.subr.mxu0 0.0
    %91 = vmatpush1.msra.mxu0 0.0
    %92 = vmatprep.subr.mxu0 0.0
    %93 = vmatpush1.msra.mxu0 0.0
    %94 = vmatprep.subr.mxu0 0.0
    %95 = vmatpush1.msra.mxu0 0.0
    %96 = vmatprep.subr.mxu0 0.0
    %97 = vmatpush1.msra.mxu0 0.0
    %98 = vmatprep.subr.mxu0 0.0
    %99 = vmatpush1.msra.mxu0 0.0
    %100 = vmatprep.subr.mxu0 0.0
    %101 = vmatpush1.msra.mxu0 0.0
    %102 = vmatprep.subr.mxu0 0.0
    %103 = vmatpush1.msra.mxu0 0.0
    %104 = vmatprep.subr.mxu0 0.0
    %105 = vmatpush1.msra.mxu0 0.0
    %106 = vmatprep.subr.mxu0 0.0
    %107 = vmatpush1.msra.mxu0 0.0
    %108 = vmatprep.subr.mxu0 0.0
    %109 = vmatpush1.msra.mxu0 0.0
    %110 = vmatprep.subr.mxu0 0.0
    %111 = vmatpush1.msra.mxu0 0.0
    %112 = vmatprep.mubr.f32.mxu0 0.0
    %113 = vmatmul.mubr.f32.gmra.mrb[0].mxu0 %v25
    %v114 = vpop.f32.mrb[0].mxu0
    %v115 = vadd.f32 %v47, %v114
    %v116 = vpop.f32.mrb[0].mxu0
    %117 = vmatprep.mubr.f32.mxu0 0.0
    %118 = vmatmul.mubr.f32.gmra.mrb[0].mxu0 %v26
    %v119 = vpop.f32.mrb[0].mxu0
    %v120 = vadd.f32 %v47, %v119
    %v121 = vpop.f32.mrb[0].mxu0
    %122 = vdwg.mxu0
    %v123 = vmax.f32 %v115, 0.0
    %v124 = vmax.f32 %v120, 0.0
    %s125 = scalar_lea.vmem [#allocation2], 128
    %v126 = vld [vmem:[%s125] sm:$0xff]
    %v127 = vld [vmem:[%s125 + $0x8] sm:$0xff]
    %v128 = vld [vmem:[%s125 + $0x10] sm:$0xff]
    %v129 = vld [vmem:[%s125 + $0x18] sm:$0xff]
    %v130 = vld [vmem:[%s125 + $0x20] sm:$0xff]
    %v131 = vld [vmem:[%s125 + $0x28] sm:$0xff]
    %v132 = vld [vmem:[%s125 + $0x30] sm:$0xff]
    %v133 = vld [vmem:[%s125 + $0x38] sm:$0xff]
    %v134 = vld [vmem:[%s125 + $0x40] sm:$0xff]
    %v135 = vld [vmem:[%s125 + $0x48] sm:$0xff]
    %v136 = vld [vmem:[%s125 + $0x50] sm:$0xff]
    %v137 = vld [vmem:[%s125 + $0x58] sm:$0xff]
    %v138 = vld [vmem:[%s125 + $0x60] sm:$0xff]
    %v139 = vld [vmem:[%s125 + $0x68] sm:$0xff]
    %v140 = vld [vmem:[%s125 + $0x70] sm:$0xff]
    %v141 = vld [vmem:[%s125 + $0x78] sm:$0xff]
    %v142 = vld [vmem:[%s125 + $0x78] sm:$0x1]
    %v143 = vlaneseq
    %v144 = vshrl.u32 %v143, 7
    %v145 = vsub.s32 0, %v144
    %v146 = vrot.slane %v142, %v145
    %147 = vmatprep.subr.mxu0 0.0
    %148 = vmatpush1.msra.mxu0 %v126
    %149 = vmatprep.subr.mxu0 0.0
    %150 = vmatpush1.msra.mxu0 %v127
    %151 = vmatprep.subr.mxu0 0.0
    %152 = vmatpush1.msra.mxu0 %v128
    %153 = vmatprep.subr.mxu0 0.0
    %154 = vmatpush1.msra.mxu0 %v129
    %155 = vmatprep.subr.mxu0 0.0
    %156 = vmatpush1.msra.mxu0 %v130
    %157 = vmatprep.subr.mxu0 0.0
    %158 = vmatpush1.msra.mxu0 %v131
    %159 = vmatprep.subr.mxu0 0.0
    %160 = vmatpush1.msra.mxu0 %v132
    %161 = vmatprep.subr.mxu0 0.0
    %162 = vmatpush1.msra.mxu0 %v133
    %163 = vmatprep.subr.mxu0 0.0
    %164 = vmatpush1.msra.mxu0 %v134
    %165 = vmatprep.subr.mxu0 0.0
    %166 = vmatpush1.msra.mxu0 %v135
    %167 = vmatprep.subr.mxu0 0.0
    %168 = vmatpush1.msra.mxu0 %v136
    %169 = vmatprep.subr.mxu0 0.0
    %170 = vmatpush1.msra.mxu0 %v137
    %171 = vmatprep.subr.mxu0 0.0
    %172 = vmatpush1.msra.mxu0 %v138
    %173 = vmatprep.subr.mxu0 0.0
    %174 = vmatpush1.msra.mxu0 %v139
    %175 = vmatprep.subr.mxu0 0.0
    %176 = vmatpush1.msra.mxu0 %v140
    %177 = vmatprep.subr.mxu0 0.0
    %178 = vmatpush1.msra.mxu0 %v141
    %179 = vmatprep.subr.mxu0 0.0
    %180 = vmatpush1.msra.mxu0 0.0
    %181 = vmatprep.subr.mxu0 0.0
    %182 = vmatpush1.msra.mxu0 0.0
    %183 = vmatprep.subr.mxu0 0.0
    %184 = vmatpush1.msra.mxu0 0.0
    %185 = vmatprep.subr.mxu0 0.0
    %186 = vmatpush1.msra.mxu0 0.0
    %187 = vmatprep.subr.mxu0 0.0
    %188 = vmatpush1.msra.mxu0 0.0
    %189 = vmatprep.subr.mxu0 0.0
    %190 = vmatpush1.msra.mxu0 0.0
    %191 = vmatprep.subr.mxu0 0.0
    %192 = vmatpush1.msra.mxu0 0.0
    %193 = vmatprep.subr.mxu0 0.0
    %194 = vmatpush1.msra.mxu0 0.0
    %195 = vmatprep.subr.mxu0 0.0
    %196 = vmatpush1.msra.mxu0 0.0
    %197 = vmatprep.subr.mxu0 0.0
    %198 = vmatpush1.msra.mxu0 0.0
    %199 = vmatprep.subr.mxu0 0.0
    %200 = vmatpush1.msra.mxu0 0.0
    %201 = vmatprep.subr.mxu0 0.0
    %202 = vmatpush1.msra.mxu0 0.0
    %203 = vmatprep.subr.mxu0 0.0
    %204 = vmatpush1.msra.mxu0 0.0
    %205 = vmatprep.subr.mxu0 0.0
    %206 = vmatpush1.msra.mxu0 0.0
    %207 = vmatprep.subr.mxu0 0.0
    %208 = vmatpush1.msra.mxu0 0.0
    %209 = vmatprep.subr.mxu0 0.0
    %210 = vmatpush1.msra.mxu0 0.0
    %211 = vmatprep.mubr.f32.mxu0 0.0
    %212 = vmatmul.mubr.f32.gmra.mrb[0].mxu0 %v123
    %v213 = vpop.f32.mrb[0].mxu0
    %v214 = vadd.f32 %v146, %v213
    %v215 = vpop.f32.mrb[0].mxu0
    %216 = vmatprep.mubr.f32.mxu0 0.0
    %217 = vmatmul.mubr.f32.gmra.mrb[0].mxu0 %v124
    %v218 = vpop.f32.mrb[0].mxu0
    %v219 = vadd.f32 %v146, %v218
    %v220 = vpop.f32.mrb[0].mxu0
    %221 = vdwg.mxu0
    %v222 = vtanh.pop %v214
    %v223 = vtanh.pop %v219
    %s224 = scalar_lea.vmem [#allocation2], 256
    %v225 = vld [vmem:[%s224] sm:$0xff]
    %v226 = vld [vmem:[%s224 + $0x8] sm:$0xff]
    %v227 = vld [vmem:[%s224 + $0x10] sm:$0xff]
    %v228 = vld [vmem:[%s224 + $0x18] sm:$0xff]
    %v229 = vld [vmem:[%s224 + $0x20] sm:$0xff]
    %v230 = vld [vmem:[%s224 + $0x28] sm:$0xff]
    %v231 = vld [vmem:[%s224 + $0x30] sm:$0xff]
    %v232 = vld [vmem:[%s224 + $0x38] sm:$0xff]
    %v233 = vld [vmem:[%s224 + $0x40] sm:$0xff]
    %v234 = vld [vmem:[%s224 + $0x48] sm:$0xff]
    %v235 = vld [vmem:[%s224 + $0x50] sm:$0xff]
    %v236 = vld [vmem:[%s224 + $0x58] sm:$0xff]
    %v237 = vld [vmem:[%s224 + $0x60] sm:$0xff]
    %v238 = vld [vmem:[%s224 + $0x68] sm:$0xff]
    %v239 = vld [vmem:[%s224 + $0x70] sm:$0xff]
    %v240 = vld [vmem:[%s224 + $0x78] sm:$0xff]
    %v241 = vld [vmem:[%s224 + $0x78] sm:$0x1]
    %v242 = vlaneseq
    %v243 = vshrl.u32 %v242, 7
    %v244 = vsub.s32 0, %v243
    %v245 = vrot.slane %v241, %v244
    %246 = vmatprep.subr.mxu0 0.0
    %247 = vmatpush1.msra.mxu0 %v225
    %248 = vmatprep.subr.mxu0 0.0
    %249 = vmatpush1.msra.mxu0 %v226
    %250 = vmatprep.subr.mxu0 0.0
    %251 = vmatpush1.msra.mxu0 %v227
    %252 = vmatprep.subr.mxu0 0.0
    %253 = vmatpush1.msra.mxu0 %v228
    %254 = vmatprep.subr.mxu0 0.0
    %255 = vmatpush1.msra.mxu0 %v229
    %256 = vmatprep.subr.mxu0 0.0
    %257 = vmatpush1.msra.mxu0 %v230
    %258 = vmatprep.subr.mxu0 0.0
    %259 = vmatpush1.msra.mxu0 %v231
    %260 = vmatprep.subr.mxu0 0.0
    %261 = vmatpush1.msra.mxu0 %v232
    %262 = vmatprep.subr.mxu0 0.0
    %263 = vmatpush1.msra.mxu0 %v233
    %264 = vmatprep.subr.mxu0 0.0
    %265 = vmatpush1.msra.mxu0 %v234
    %266 = vmatprep.subr.mxu0 0.0
    %267 = vmatpush1.msra.mxu0 %v235
    %268 = vmatprep.subr.mxu0 0.0
    %269 = vmatpush1.msra.mxu0 %v236
    %270 = vmatprep.subr.mxu0 0.0
    %271 = vmatpush1.msra.mxu0 %v237
    %272 = vmatprep.subr.mxu0 0.0
    %273 = vmatpush1.msra.mxu0 %v238
    %274 = vmatprep.subr.mxu0 0.0
    %275 = vmatpush1.msra.mxu0 %v239
    %276 = vmatprep.subr.mxu0 0.0
    %277 = vmatpush1.msra.mxu0 %v240
    %278 = vmatprep.subr.mxu0 0.0
    %279 = vmatpush1.msra.mxu0 0.0
    %280 = vmatprep.subr.mxu0 0.0
    %281 = vmatpush1.msra.mxu0 0.0
    %282 = vmatprep.subr.mxu0 0.0
    %283 = vmatpush1.msra.mxu0 0.0
    %284 = vmatprep.subr.mxu0 0.0
    %285 = vmatpush1.msra.mxu0 0.0
    %286 = vmatprep.subr.mxu0 0.0
    %287 = vmatpush1.msra.mxu0 0.0
    %288 = vmatprep.subr.mxu0 0.0
    %289 = vmatpush1.msra.mxu0 0.0
    %290 = vmatprep.subr.mxu0 0.0
    %291 = vmatpush1.msra.mxu0 0.0
    %292 = vmatprep.subr.mxu0 0.0
    %293 = vmatpush1.msra.mxu0 0.0
    %294 = vmatprep.subr.mxu0 0.0
    %295 = vmatpush1.msra.mxu0 0.0
    %296 = vmatprep.subr.mxu0 0.0
    %297 = vmatpush1.msra.mxu0 0.0
    %298 = vmatprep.subr.mxu0 0.0
    %299 = vmatpush1.msra.mxu0 0.0
    %300 = vmatprep.subr.mxu0 0.0
    %301 = vmatpush1.msra.mxu0 0.0
    %302 = vmatprep.subr.mxu0 0.0
    %303 = vmatpush1.msra.mxu0 0.0
    %304 = vmatprep.subr.mxu0 0.0
    %305 = vmatpush1.msra.mxu0 0.0
    %306 = vmatprep.subr.mxu0 0.0
    %307 = vmatpush1.msra.mxu0 0.0
    %308 = vmatprep.subr.mxu0 0.0
    %309 = vmatpush1.msra.mxu0 0.0
    %310 = vmatprep.mubr.f32.mxu0 0.0
    %311 = vmatmul.mubr.f32.gmra.mrb[0].mxu0 %v222
    %v312 = vpop.f32.mrb[0].mxu0
    %v313 = vadd.f32 %v245, %v312
    %v314 = vpop.f32.mrb[0].mxu0
    %315 = vmatprep.mubr.f32.mxu0 0.0
    %316 = vmatmul.mubr.f32.gmra.mrb[0].mxu0 %v223
    %v317 = vpop.f32.mrb[0].mxu0
    %v318 = vadd.f32 %v245, %v317
    %v319 = vpop.f32.mrb[0].mxu0
    %320 = vdwg.mxu0
    %v321 = vtanh.pop %v313
    %v322 = vtanh.pop %v318
    %s323 = scalar_lea.vmem [#allocation2], 384
    %v324 = vld [vmem:[%s323] sm:$0xff]
    %v325 = vld [vmem:[%s323 + $0x8] sm:$0xff]
    %v326 = vld [vmem:[%s323 + $0x10] sm:$0xff]
    %v327 = vld [vmem:[%s323 + $0x18] sm:$0xff]
    %v328 = vld [vmem:[%s323 + $0x20] sm:$0xff]
    %v329 = vld [vmem:[%s323 + $0x28] sm:$0xff]
    %v330 = vld [vmem:[%s323 + $0x30] sm:$0xff]
    %v331 = vld [vmem:[%s323 + $0x38] sm:$0xff]
    %v332 = vld [vmem:[%s323 + $0x40] sm:$0xff]
    %v333 = vld [vmem:[%s323 + $0x48] sm:$0xff]
    %v334 = vld [vmem:[%s323 + $0x50] sm:$0xff]
    %v335 = vld [vmem:[%s323 + $0x58] sm:$0xff]
    %v336 = vld [vmem:[%s323 + $0x60] sm:$0xff]
    %v337 = vld [vmem:[%s323 + $0x68] sm:$0xff]
    %v338 = vld [vmem:[%s323 + $0x70] sm:$0xff]
    %v339 = vld [vmem:[%s323 + $0x78] sm:$0xff]
    %v340 = vld [vmem:[%s323 + $0x78] sm:$0x1]
    %v341 = vlaneseq
    %v342 = vshrl.u32 %v341, 7
    %v343 = vsub.s32 0, %v342
    %v344 = vrot.slane %v340, %v343
    %345 = vmatprep.subr.mxu0 0.0
    %346 = vmatpush1.msra.mxu0 %v324
    %347 = vmatprep.subr.mxu0 0.0
    %348 = vmatpush1.msra.mxu0 %v325
    %349 = vmatprep.subr.mxu0 0.0
    %350 = vmatpush1.msra.mxu0 %v326
    %351 = vmatprep.subr.mxu0 0.0
    %352 = vmatpush1.msra.mxu0 %v327
    %353 = vmatprep.subr.mxu0 0.0
    %354 = vmatpush1.msra.mxu0 %v328
    %355 = vmatprep.subr.mxu0 0.0
    %356 = vmatpush1.msra.mxu0 %v329
    %357 = vmatprep.subr.mxu0 0.0
    %358 = vmatpush1.msra.mxu0 %v330
    %359 = vmatprep.subr.mxu0 0.0
    %360 = vmatpush1.msra.mxu0 %v331
    %361 = vmatprep.subr.mxu0 0.0
    %362 = vmatpush1.msra.mxu0 %v332
    %363 = vmatprep.subr.mxu0 0.0
    %364 = vmatpush1.msra.mxu0 %v333
    %365 = vmatprep.subr.mxu0 0.0
    %366 = vmatpush1.msra.mxu0 %v334
    %367 = vmatprep.subr.mxu0 0.0
    %368 = vmatpush1.msra.mxu0 %v335
    %369 = vmatprep.subr.mxu0 0.0
    %370 = vmatpush1.msra.mxu0 %v336
    %371 = vmatprep.subr.mxu0 0.0
    %372 = vmatpush1.msra.mxu0 %v337
    %373 = vmatprep.subr.mxu0 0.0
    %374 = vmatpush1.msra.mxu0 %v338
    %375 = vmatprep.subr.mxu0 0.0
    %376 = vmatpush1.msra.mxu0 %v339
    %377 = vmatprep.subr.mxu0 0.0
    %378 = vmatpush1.msra.mxu0 0.0
    %379 = vmatprep.subr.mxu0 0.0
    %380 = vmatpush1.msra.mxu0 0.0
    %381 = vmatprep.subr.mxu0 0.0
    %382 = vmatpush1.msra.mxu0 0.0
    %383 = vmatprep.subr.mxu0 0.0
    %384 = vmatpush1.msra.mxu0 0.0
    %385 = vmatprep.subr.mxu0 0.0
    %386 = vmatpush1.msra.mxu0 0.0
    %387 = vmatprep.subr.mxu0 0.0
    %388 = vmatpush1.msra.mxu0 0.0
    %389 = vmatprep.subr.mxu0 0.0
    %390 = vmatpush1.msra.mxu0 0.0
    %391 = vmatprep.subr.mxu0 0.0
    %392 = vmatpush1.msra.mxu0 0.0
    %393 = vmatprep.subr.mxu0 0.0
    %394 = vmatpush1.msra.mxu0 0.0
    %395 = vmatprep.subr.mxu0 0.0
    %396 = vmatpush1.msra.mxu0 0.0
    %397 = vmatprep.subr.mxu0 0.0
    %398 = vmatpush1.msra.mxu0 0.0
    %399 = vmatprep.subr.mxu0 0.0
    %400 = vmatpush1.msra.mxu0 0.0
    %401 = vmatprep.subr.mxu0 0.0
    %402 = vmatpush1.msra.mxu0 0.0
    %403 = vmatprep.subr.mxu0 0.0
    %404 = vmatpush1.msra.mxu0 0.0
    %405 = vmatprep.subr.mxu0 0.0
    %406 = vmatpush1.msra.mxu0 0.0
    %407 = vmatprep.subr.mxu0 0.0
    %408 = vmatpush1.msra.mxu0 0.0
    %409 = vmatprep.mubr.f32.mxu0 0.0
    %410 = vmatmul.mubr.f32.gmra.mrb[0].mxu0 %v321
    %v411 = vpop.f32.mrb[0].mxu0
    %v412 = vadd.f32 %v344, %v411
    %v413 = vpop.f32.mrb[0].mxu0
    %414 = vmatprep.mubr.f32.mxu0 0.0
    %415 = vmatmul.mubr.f32.gmra.mrb[0].mxu0 %v322
    %v416 = vpop.f32.mrb[0].mxu0
    %v417 = vadd.f32 %v344, %v416
    %v418 = vpop.f32.mrb[0].mxu0
    %419 = vdwg.mxu0
    %v420 = vmul.f32 %v412, 0.5
    %v421 = vmul.f32 %v417, 0.5
    %v422 = vmul.f32 %v412, 0.70710677
    %v423 = vmul.f32 %v417, 0.70710677
    %v424 = verf.f32.pop %v422
    %v425 = verf.f32.pop %v423
    %v426 = vadd.f32 %v424, 1.0
    %v427 = vadd.f32 %v425, 1.0
    %v428 = vmul.f32 %v420, %v426
    %v429 = vmul.f32 %v421, %v427
    %s430 = scalar_lea.vmem [#allocation2], 512
    %v431 = vld [vmem:[%s430] sm:$0xff]
    %v432 = vld [vmem:[%s430 + $0x8] sm:$0xff]
    %v433 = vld [vmem:[%s430 + $0x10] sm:$0xff]
    %v434 = vld [vmem:[%s430 + $0x18] sm:$0xff]
    %v435 = vld [vmem:[%s430 + $0x20] sm:$0xff]
    %v436 = vld [vmem:[%s430 + $0x28] sm:$0xff]
    %v437 = vld [vmem:[%s430 + $0x30] sm:$0xff]
    %v438 = vld [vmem:[%s430 + $0x38] sm:$0xff]
    %v439 = vld [vmem:[%s430 + $0x40] sm:$0xff]
    %v440 = vld [vmem:[%s430 + $0x48] sm:$0xff]
    %v441 = vld [vmem:[%s430 + $0x50] sm:$0xff]
    %v442 = vld [vmem:[%s430 + $0x58] sm:$0xff]
    %v443 = vld [vmem:[%s430 + $0x60] sm:$0xff]
    %v444 = vld [vmem:[%s430 + $0x68] sm:$0xff]
    %v445 = vld [vmem:[%s430 + $0x70] sm:$0xff]
    %v446 = vld [vmem:[%s430 + $0x78] sm:$0xff]
    %v447 = vld [vmem:[%s430 + $0x78] sm:$0x1]
    %v448 = vlaneseq
    %v449 = vshrl.u32 %v448, 7
    %v450 = vsub.s32 0, %v449
    %v451 = vrot.slane %v447, %v450
    %452 = vmatprep.subr.mxu0 0.0
    %453 = vmatpush1.msra.mxu0 %v431
    %454 = vmatprep.subr.mxu0 0.0
    %455 = vmatpush1.msra.mxu0 %v432
    %456 = vmatprep.subr.mxu0 0.0
    %457 = vmatpush1.msra.mxu0 %v433
    %458 = vmatprep.subr.mxu0 0.0
    %459 = vmatpush1.msra.mxu0 %v434
    %460 = vmatprep.subr.mxu0 0.0
    %461 = vmatpush1.msra.mxu0 %v435
    %462 = vmatprep.subr.mxu0 0.0
    %463 = vmatpush1.msra.mxu0 %v436
    %464 = vmatprep.subr.mxu0 0.0
    %465 = vmatpush1.msra.mxu0 %v437
    %466 = vmatprep.subr.mxu0 0.0
    %467 = vmatpush1.msra.mxu0 %v438
    %468 = vmatprep.subr.mxu0 0.0
    %469 = vmatpush1.msra.mxu0 %v439
    %470 = vmatprep.subr.mxu0 0.0
    %471 = vmatpush1.msra.mxu0 %v440
    %472 = vmatprep.subr.mxu0 0.0
    %473 = vmatpush1.msra.mxu0 %v441
    %474 = vmatprep.subr.mxu0 0.0
    %475 = vmatpush1.msra.mxu0 %v442
    %476 = vmatprep.subr.mxu0 0.0
    %477 = vmatpush1.msra.mxu0 %v443
    %478 = vmatprep.subr.mxu0 0.0
    %479 = vmatpush1.msra.mxu0 %v444
    %480 = vmatprep.subr.mxu0 0.0
    %481 = vmatpush1.msra.mxu0 %v445
    %482 = vmatprep.subr.mxu0 0.0
    %483 = vmatpush1.msra.mxu0 %v446
    %484 = vmatprep.subr.mxu0 0.0
    %485 = vmatpush1.msra.mxu0 0.0
    %486 = vmatprep.subr.mxu0 0.0
    %487 = vmatpush1.msra.mxu0 0.0
    %488 = vmatprep.subr.mxu0 0.0
    %489 = vmatpush1.msra.mxu0 0.0
    %490 = vmatprep.subr.mxu0 0.0
    %491 = vmatpush1.msra.mxu0 0.0
    %492 = vmatprep.subr.mxu0 0.0
    %493 = vmatpush1.msra.mxu0 0.0
    %494 = vmatprep.subr.mxu0 0.0
    %495 = vmatpush1.msra.mxu0 0.0
    %496 = vmatprep.subr.mxu0 0.0
    %497 = vmatpush1.msra.mxu0 0.0
    %498 = vmatprep.subr.mxu0 0.0
    %499 = vmatpush1.msra.mxu0 0.0
    %500 = vmatprep.subr.mxu0 0.0
    %501 = vmatpush1.msra.mxu0 0.0
    %502 = vmatprep.subr.mxu0 0.0
    %503 = vmatpush1.msra.mxu0 0.0
    %504 = vmatprep.subr.mxu0 0.0
    %505 = vmatpush1.msra.mxu0 0.0
    %506 = vmatprep.subr.mxu0 0.0
    %507 = vmatpush1.msra.mxu0 0.0
    %508 = vmatprep.subr.mxu0 0.0
    %509 = vmatpush1.msra.mxu0 0.0
    %510 = vmatprep.subr.mxu0 0.0
    %511 = vmatpush1.msra.mxu0 0.0
    %512 = vmatprep.subr.mxu0 0.0
    %513 = vmatpush1.msra.mxu0 0.0
    %514 = vmatprep.subr.mxu0 0.0
    %515 = vmatpush1.msra.mxu0 0.0
    %516 = vmatprep.mubr.f32.mxu0 0.0
    %517 = vmatmul.mubr.f32.gmra.mrb[0].mxu0 %v428
    %v518 = vpop.f32.mrb[0].mxu0
    %v519 = vadd.f32 %v451, %v518
    %v520 = vpop.f32.mrb[0].mxu0
    %521 = vmatprep.mubr.f32.mxu0 0.0
    %522 = vmatmul.mubr.f32.gmra.mrb[0].mxu0 %v429
    %v523 = vpop.f32.mrb[0].mxu0
    %v524 = vadd.f32 %v451, %v523
    %v525 = vpop.f32.mrb[0].mxu0
    %526 = vdwg.mxu0
    %527 = vst [vmem:[%s2] sm:$0xff] %v519
    %528 = vst [vmem:[%s2 + $0x8] sm:$0xff] %v524
    // Predicated region
    $region14: #{virtuoso_forward.1} parent=1 // pred_check
      _
    $region15: #{virtuoso_forward.1} parent=1 // pred_check_branch
      %530 = sbr.rel (0) target = $region17
    $region16: #{virtuoso_forward.1} parent=1 // pred_region
      _
    $region17: #{virtuoso_forward.1} parent=1 // pred_fallthru
      _
    // Predicated region
    $region18: #{virtuoso_forward.1} parent=1 // pred_check
      _
    $region19: #{virtuoso_forward.1} parent=1 // pred_check_branch
      %532 = sbr.rel (0) target = $region21
    $region20: #{virtuoso_forward.1} parent=1 // pred_region
      _
    $region21: #{virtuoso_forward.1} parent=1 // pred_fallthru
      _
    %533 = vsyncpa [#allocation3], 1

</llo_original>
